<compile_context>
chip_gen: v5e
topology: v5e:2x2
jax: 0.10.0
libtpu: 0.0.40
codegen_flags: <defaults>
</compile_context>

<pallas_src>
import numpy as np
import jax
import jax.numpy as jnp
from jax.experimental import pallas as pl
from jax.experimental.pallas import tpu as pltpu


# ----------------------------------------------------------------------------
# Spherical Bessel functions (setup / glue, plain JAX)
# ----------------------------------------------------------------------------
def sph_j0(x):
    # j0(x) = sin(x)/x   (q > 0 and alphas > 0 in this module, so x != 0 here)
    return jnp.sin(x) / x


def sph_j1(x):
    # j1(x) = sin(x)/x^2 - cos(x)/x
    return jnp.sin(x) / (x * x) - jnp.cos(x) / x


# ----------------------------------------------------------------------------
# Parameter / basis construction (mirrors Kramer_fit.__init__, glue in JAX)
# ----------------------------------------------------------------------------
def build_kramer_params(q_tensor, i_obs, radius, padding=5, porod_factor=8.0):
    q = jnp.asarray(q_tensor, jnp.float32)
    i_obs = jnp.asarray(i_obs, jnp.float32)

    max_k = int(float(jnp.max(q * radius * 2.0 / np.pi)) + 1.0) + padding
    alphas = jnp.asarray(np.arange(1, max_k + 1) * np.pi, jnp.float32)
    qks = alphas / (2.0 * radius)

    # intensity_basis_functions
    t = q * radius * 2.0                                           # (N,)
    tmp_top = jnp.outer(alphas / sph_j1(alphas), sph_j0(t))        # (K, N)
    tmp_bottom = jnp.outer(alphas ** 2.0, jnp.ones_like(t)) - t * t
    # NOTE: guard the exact Bessel-node singularity 2*q*radius == k*pi, where
    # the torch original would produce 0/0.  q never lands exactly on a node
    # in practice; everywhere else the math is identical.
    tmp_bottom = jnp.where(tmp_bottom == 0.0, jnp.float32(1e-12), tmp_bottom)
    Skq = (2.0 * tmp_top / tmp_bottom).T                           # (N, K)

    # initial_guess
    q_np = np.asarray(q)
    i_np = np.asarray(i_obs)
    qks_np = np.asarray(qks)
    q_max = float(q_np.max())
    Iqks = []
    for kk, qk in enumerate(qks_np):
        if qk < q_max:
            this_indx = int(np.argmin(np.abs(q_np - qk)))
            Iqks.append(float(i_np[this_indx]))
        else:
            ratio = ((kk + 1) / (kk + 2)) ** porod_factor
            Iqks.append(Iqks[-1] * ratio)
    Iqks = jnp.asarray(Iqks, jnp.float32)

    weights = jnp.log(jnp.abs(Iqks))                               # (K,)
    log_bg = jnp.min(jnp.log(jnp.abs(Iqks) / 20.0))                # scalar

    return (Skq.astype(jnp.float32),
            weights.astype(jnp.float32),
            log_bg.astype(jnp.float32))


# ----------------------------------------------------------------------------
# One-time basis / weight layout preparation (hoisted out of the forward path)
# ----------------------------------------------------------------------------
def _round_up(x, m):
    return ((x + m - 1) // m) * m


def prepare_kramer_basis(Skq, num_lane_tiles=1, max_tile_n=None):
    """Pad + transpose the constant basis ONCE per fit.

    Returns (SkqT_pad, tile_n, N, K).  SkqT_pad has shape (K_pad, N_pad) with
    the q axis on lanes.  Padded rows/cols are exactly zero by construction,
    which together with zero-padded weights (exp(0) = 1) guarantees padded
    entries contribute nothing to the result -- do not change this invariant.

    num_lane_tiles: keep 1 on single-TensorCore chips (v5e/v6e) so the grid
    collapses to one step; pass 2 on v7x so the "parallel" lane axis shards
    across both TensorCores.
    """
    Skq = jnp.asarray(Skq, jnp.float32)
    N, K = Skq.shape
    K_pad = _round_up(K, 8)                                # sublane multiple
    num_lane_tiles = max(1, int(num_lane_tiles))
    N_pad = _round_up(N, 128 * num_lane_tiles)
    tile_n = N_pad // num_lane_tiles                       # multiple of 128
    if max_tile_n is not None and tile_n > max_tile_n:
        tile_n = _round_up(min(int(max_tile_n), tile_n), 128)
        N_pad = _round_up(N, tile_n)
    skqT_pad = jnp.zeros((K_pad, N_pad), jnp.float32).at[:K, :N].set(Skq.T)
    return skqT_pad, tile_n, N, K


def pad_weights_single(weights, K_pad):
    """(K,) -> (K_pad, 1) column.  Padded entries are 0 (hit zero basis rows).
    Store the padded column in optimizer state so this is not re-done per call."""
    K = weights.shape[0]
    return jnp.zeros((K_pad, 1), jnp.float32).at[:K, 0].set(weights)


def pad_weights_batch(weights_batch, K_pad, sublane=8):
    """(B, K) -> (B_pad, K_pad).  Padded entries are 0 (exp(0)=1 * zero rows)."""
    B, K = weights_batch.shape
    B_pad = _round_up(max(B, 1), sublane)
    return jnp.zeros((B_pad, K_pad), jnp.float32).at[:B, :K].set(weights_batch)


# ----------------------------------------------------------------------------
# Kernels
# ----------------------------------------------------------------------------
def _kramer_single_kernel(skqT_ref, wcol_ref, bg_ref, out_ref):
    # Single-candidate path: VPU multiply + sublane (XLU) reduce.  Avoids a
    # degenerate M=1 MXU matvec; exp() runs on the EUP slot.
    ew = jnp.exp(wcol_ref[...])                               # (K_pad, 1)
    prod = skqT_ref[...] * ew                                 # (K_pad, TN)
    out_ref[...] = (jnp.sum(prod, axis=0, keepdims=True)      # (1, TN)
                    + jnp.exp(bg_ref[0]))


def _kramer_batched_kernel(skqT_ref, w_ref, bg_ref, out_ref):
    # Batched candidates: fill the MXU M dimension and reuse the single basis
    # stream for all B rows; (B_pad, TN) output is fully vreg-dense.
    ew = jnp.exp(w_ref[...])                                  # (B_pad, K_pad)
    acc = jnp.dot(ew, skqT_ref[...],
                  preferred_element_type=jnp.float32)         # (B_pad, TN)
    out_ref[...] = acc + jnp.exp(bg_ref[0])


def _compiler_params(K_pad, tile_n, rows):
    # double-buffered basis + weight tiles and output tile, f32, plus slack.
    need = 2 * (K_pad * tile_n + rows * K_pad + rows * tile_n) * 4
    need = int(need * 1.5) + (1 << 20)
    kwargs = dict(dimension_semantics=("parallel",))
    if need > (16 << 20):          # beyond v5e's default scoped VMEM limit
        kwargs["vmem_limit_bytes"] = int(min(need, 48 << 20))  # v7x headroom
    return pltpu.CompilerParams(**kwargs)


# ----------------------------------------------------------------------------
# Wrappers
# ----------------------------------------------------------------------------
def kramer_forward(skqT_pad, w_col, log_bg, n_q, tile_n, n_k):
    """result = Skq @ exp(weights) + exp(log_bg)   (module forward semantics).

    skqT_pad and w_col are the pre-padded basis / weight column (pad once,
    outside the fit loop)."""
    K_pad, N_pad = skqT_pad.shape
    bg = jnp.reshape(jnp.asarray(log_bg, jnp.float32), (1,))
    grid = (N_pad // tile_n,)

    cost = pl.CostEstimate(
        flops=2 * n_k * n_q,
        transcendentals=n_k + 1,
        bytes_accessed=4 * (K_pad * N_pad + K_pad + N_pad),
    )
    out = pl.pallas_call(
        _kramer_single_kernel,
        out_shape=jax.ShapeDtypeStruct((1, N_pad), jnp.float32),
        grid_spec=pltpu.PrefetchScalarGridSpec(
            num_scalar_prefetch=0,
            grid=grid,
            in_specs=[
                pl.BlockSpec((K_pad, tile_n), lambda i: (0, i)),     # basis tile
                pl.BlockSpec((K_pad, 1), lambda i: (0, 0)),          # weight col
                pl.BlockSpec(memory_space=pltpu.MemorySpace.SMEM),   # log_bg
            ],
            out_specs=pl.BlockSpec((1, tile_n), lambda i: (0, i)),
        ),
        compiler_params=_compiler_params(K_pad, tile_n, rows=1),
        cost_estimate=cost,
    )(skqT_pad, w_col, bg)
    return out[0, :n_q]


def kramer_forward_batched(skqT_pad, w_pad, log_bg, n_q, tile_n, n_k, n_b):
    """result[b] = Skq @ exp(weights[b]) + exp(log_bg) for B candidate weight
    vectors in one pallas_call (fit-loop path; use B>=128/256 for MXU fill)."""
    K_pad, N_pad = skqT_pad.shape
    B_pad = w_pad.shape[0]
    bg = jnp.reshape(jnp.asarray(log_bg, jnp.float32), (1,))
    grid = (N_pad // tile_n,)

    cost = pl.CostEstimate(
        flops=2 * n_b * n_k * n_q,
        transcendentals=n_b * n_k + 1,
        bytes_accessed=4 * (K_pad * N_pad + B_pad * K_pad + B_pad * N_pad),
    )
    out = pl.pallas_call(
        _kramer_batched_kernel,
        out_shape=jax.ShapeDtypeStruct((B_pad, N_pad), jnp.float32),
        grid_spec=pltpu.PrefetchScalarGridSpec(
            num_scalar_prefetch=0,
            grid=grid,
            in_specs=[
                pl.BlockSpec((K_pad, tile_n), lambda i: (0, i)),     # basis tile
                pl.BlockSpec((B_pad, K_pad), lambda i: (0, 0)),      # weights
                pl.BlockSpec(memory_space=pltpu.MemorySpace.SMEM),   # log_bg
            ],
            out_specs=pl.BlockSpec((B_pad, tile_n), lambda i: (0, i)),
        ),
        compiler_params=_compiler_params(K_pad, tile_n, rows=B_pad),
        cost_estimate=cost,
    )(skqT_pad, w_pad, bg)
    return out[:n_b, :n_q]


# ----------------------------------------------------------------------------
# Demo / correctness check
# ----------------------------------------------------------------------------
if __name__ == "__main__":
    key = jax.random.PRNGKey(0)
    key_noise, key_batch = jax.random.split(key)

    N_Q = 16
    radius = 25.0
    q_tensor = jnp.linspace(0.02, 0.4, N_Q, dtype=jnp.float32)

    # synthetic, deterministic SAXS-like observed intensity
    noise = 0.05 * jax.random.normal(key_noise, (N_Q,), dtype=jnp.float32)
    i_obs = 100.0 / (1.0 + (q_tensor * radius) ** 2) ** 2 * (1.0 + noise) + 1e-3
    s_obs = 0.1 * jnp.sqrt(jnp.abs(i_obs))   # stored by the torch module, unused in forward

    Skq, weights, log_bg = build_kramer_params(q_tensor, i_obs, radius,
                                               padding=5, porod_factor=8.0)

    # one-time constant-basis prep (outside any optimizer loop).
    # num_lane_tiles=2 on v7x to feed both TensorCores; 1 elsewhere.
    skqT_pad, tile_n, n_q, n_k = prepare_kramer_basis(Skq, num_lane_tiles=1)
    K_pad = skqT_pad.shape[0]

    # weight padding hoisted out of the per-call forward path
    w_col = pad_weights_single(weights, K_pad)

    # ---- module forward (single candidate, VPU path) ----
    out = kramer_forward(skqT_pad, w_col, log_bg, n_q, tile_n, n_k)
    out = jax.block_until_ready(out)

    ref = (np.asarray(Skq, np.float64) @ np.exp(np.asarray(weights, np.float64))
           + np.exp(float(log_bg)))
    if not np.allclose(np.asarray(out), ref, rtol=1e-4, atol=1e-4):
        raise AssertionError("single-candidate Pallas kernel mismatch vs reference")

    # ---- batched candidate evaluation (fit-loop MXU path) ----
    B = 8   # tiny for the demo; use >=128 (v5e) / >=256 (v6e/v7x) in a real fit
    w_batch = weights[None, :] + 0.1 * jax.random.normal(
        key_batch, (B, weights.shape[0]), dtype=jnp.float32)
    w_batch_pad = pad_weights_batch(w_batch, K_pad)
    out_b = kramer_forward_batched(skqT_pad, w_batch_pad, log_bg,
                                   n_q, tile_n, n_k, B)
    out_b = jax.block_until_ready(out_b)

    ref_b = (np.exp(np.asarray(w_batch, np.float64))
             @ np.asarray(Skq, np.float64).T + np.exp(float(log_bg)))
    if not np.allclose(np.asarray(out_b), ref_b, rtol=1e-3, atol=1e-4):
        raise AssertionError("batched Pallas kernel mismatch vs reference")

    print("KERNEL_OK")
</pallas_src>

<mosaic_0001>
module attributes {stable_mosaic.version = 11 : i64} {
  func.func @_kramer_single_kernel(%arg0: i32, %arg1: memref<16x128xf32, #tpu.memory_space<vmem>>, %arg2: memref<16x1xf32, #tpu.memory_space<vmem>>, %arg3: memref<1xf32, #tpu.memory_space<smem>>, %arg4: memref<1x128xf32, #tpu.memory_space<vmem>>) attributes {dimension_semantics = [#tpu.dimension_semantics<parallel>], iteration_bounds = array<i64: 1>, scalar_prefetch = 0 : i64, scratch_operands = 0 : i64, tpu.core_type = #tpu.core_type<tc>, window_params = [{transform_indices = @transform_0, window_bounds = array<i64: 16, 128>}, {pipeline_mode = #tpu.pipeline_mode<synchronous>, transform_indices = @transform_1, window_bounds = array<i64: 16, 1>}, {transform_indices = @transform_2, window_bounds = array<i64: 1>}, {transform_indices = @transform_3, window_bounds = array<i64: 1, 128>}]} {
    %c0 = arith.constant 0 : index
    %c0_0 = arith.constant 0 : index
    %0 = vector.load %arg2[%c0, %c0_0] : memref<16x1xf32, #tpu.memory_space<vmem>>, vector<16x1xf32>
    %1 = math.exp %0 : vector<16x1xf32>
    %c0_1 = arith.constant 0 : index
    %c0_2 = arith.constant 0 : index
    %2 = vector.load %arg1[%c0_1, %c0_2] : memref<16x128xf32, #tpu.memory_space<vmem>>, vector<16x128xf32>
    %3 = vector.broadcast %1 : vector<16x1xf32> to vector<16x128xf32>
    %4 = arith.mulf %2, %3 : vector<16x128xf32>
    %cst = arith.constant dense<0.000000e+00> : vector<128xf32>
    %5 = vector.multi_reduction <add>, %4, %cst [0] : vector<16x128xf32> to vector<128xf32>
    %6 = vector.shape_cast %5 : vector<128xf32> to vector<1x128xf32>
    %c0_3 = arith.constant 0 : index
    %7 = memref.load %arg3[%c0_3] : memref<1xf32, #tpu.memory_space<smem>>
    %8 = math.exp %7 : f32
    %9 = vector.broadcast %8 : f32 to vector<1x128xf32>
    %10 = arith.addf %6, %9 : vector<1x128xf32>
    %c0_4 = arith.constant 0 : index
    %c0_5 = arith.constant 0 : index
    %11 = vector.load %arg4[%c0_4, %c0_5] : memref<1x128xf32, #tpu.memory_space<vmem>>, vector<1x128xf32>
    tpu.vector_store %arg4[%c0_4, %c0_5], %10 {strides = array<i32>} : memref<1x128xf32, #tpu.memory_space<vmem>>, vector<1x128xf32>,
    return
  }
  func.func @transform_0(%arg0: i32) -> (i32, i32) {
    %c0_i32 = arith.constant 0 : i32
    %c0_i32_0 = arith.constant 0 : i32
    return %c0_i32, %arg0 : i32, i32
  }
  func.func @transform_1(%arg0: i32) -> (i32, i32) {
    %c0_i32 = arith.constant 0 : i32
    %c0_i32_0 = arith.constant 0 : i32
    %c0_i32_1 = arith.constant 0 : i32
    return %c0_i32, %c0_i32_0 : i32, i32
  }
  func.func @transform_2(%arg0: i32) -> i32 {
    %c0_i32 = arith.constant 0 : i32
    %c0_i32_0 = arith.constant 0 : i32
    return %c0_i32 : i32
  }
  func.func @transform_3(%arg0: i32) -> (i32, i32) {
    %c0_i32 = arith.constant 0 : i32
    %c0_i32_0 = arith.constant 0 : i32
    return %c0_i32, %arg0 : i32, i32
  }
}

</mosaic_0001>

<llo_original>
// kernel: tpu_custom_call.1
$region0: #{tpu_custom_call.1}
  #allocation0 [shape = 'u32[]', space=smem, size = 0x4, offset = 0x4, fixed_abs, tag = 'smem constant byte address 0x4 - core index']
  #allocation1 [shape = 'u32[72,128]{1,0:T(1,128)}', space=vmem, size = 0x9000, scoped, tag = 'internal scratch']
  #allocation2 [shape = 'f32[1]{0:T(128)S(6)}', space=smem, size = 0x200, scoped, tag = 'scoped memory for tpu_custom_call.1']
  %s0 = inlined_call_operand.vmem [shape: f32[16,128], index: 0, kind: input, shape index: {}]
  %s1 = inlined_call_operand.vmem [shape: f32[16,1], index: 1, kind: input, shape index: {}]
  %s2 = inlined_call_operand.<no memory space> [shape: f32[1], index: 2, kind: input, shape index: {}]
  %s3 = inlined_call_operand.hbm [shape: f32[1,128], index: 3, kind: output, shape index: {}]
  %s4 = sld [smem:[#allocation0]]
  $region22: #{tpu_custom_call.1} parent=0
    _
  %s6 = ssub.s32 1, %s4
  %s7 = scalar_select 0, %s6, %s4
  %8 = sst [smem:[#allocation2]] %s2
  $region1: #{tpu_custom_call.1} parent=0
    #allocation3 [shape = 'u8[512]{0}', space=vmem, size = 0x400, scoped, tag = 'output window, operand 0, single buffered']
    #allocation4 [shape = 's32[1]{0}', space=sflag, size = 0x4, scoped, tag = 'scoped memory for tpu_custom_call.1']
    %9 = vsyncpa [#allocation4], 0
    // Predicated region
    $region2: #{tpu_custom_call.1} parent=1 // pred_check
      _
    $region3: #{tpu_custom_call.1} parent=1 // pred_check_branch
      %11 = sbr.rel (0) target = $region5
    $region4: #{tpu_custom_call.1} parent=1 // pred_region
      _
    $region5: #{tpu_custom_call.1} parent=1 // pred_fallthru
      _
    // Predicated region
    $region6: #{tpu_custom_call.1} parent=1 // pred_check
      _
    $region7: #{tpu_custom_call.1} parent=1 // pred_check_branch
      %13 = sbr.rel (0) target = $region9
    $region8: #{tpu_custom_call.1} parent=1 // pred_region
      _
    $region9: #{tpu_custom_call.1} parent=1 // pred_fallthru
      _
    // Predicated region
    $region10: #{tpu_custom_call.1} parent=1 // pred_check
      _
    $region11: #{tpu_custom_call.1} parent=1 // pred_check_branch
      %15 = sbr.rel (0) target = $region13
    $region12: #{tpu_custom_call.1} parent=1 // pred_region
      _
    $region13: #{tpu_custom_call.1} parent=1 // pred_fallthru
      _
    %v16 = vld [vmem:[%s1] sm:$0xff]
    %v17 = vld [vmem:[%s1 + $0x8] sm:$0xff]
    %v18 = vmul.f32 %v16, 1.442695
    %v19 = vpow.pop %v18
    %v20 = vmul.f32 %v17, 1.442695
    %v21 = vpow.pop %v20
    %v22 = vld [vmem:[%s0] sm:$0xff]
    %v23 = vld [vmem:[%s0 + $0x8] sm:$0xff]
    %25 = vset.pattern.permute.xlu0 0
    %26 = vperm.xlu0 %25, %v19
    %v27 = vpop.permute.xlu0 %26
    %30 = vset.pattern.permute.xlu0 0
    %31 = vperm.xlu0 %30, %v21
    %v32 = vpop.permute.xlu0 %31
    %v34 = vmul.f32 %v22, %v27
    %v35 = vmul.f32 %v23, %v32
    %v36 = vadd.f32 %v34, %v35
    %v37 = vrot.slane %v36, 4
    %v38 = vadd.f32 %v36, %v37
    %v39 = vrot.slane %v38, 2
    %v40 = vadd.f32 %v38, %v39
    %v41 = vrot.slane %v40, 1
    %v42 = vadd.f32 %v40, %v41
    %s43 = sld [smem:[#allocation2]]
    %v44 = vstv %s43
    %v45 = vmul.f32 %v44, 1.442695
    %v46 = vpow.pop %v45
    %s47 = vtos %v46
    %v48 = vstv %s47
    %v49 = vadd.f32 %v42, %v48
    %50 = vst [vmem:[#allocation3] sm:$0x1] %v49
    // Predicated region
    $region14: #{tpu_custom_call.1} parent=1 // pred_check
      _
    $region15: #{tpu_custom_call.1} parent=1 // pred_check_branch
      %52 = sbr.rel (0) target = $region17
    $region16: #{tpu_custom_call.1} parent=1 // pred_region
      %54 = vsyncadd [#allocation4], 0
      %s56 = sshll.u32 [#allocation3], 4
      %s57 = int_to_ptr.vmem [resolvable:$true] %s56
      %s58 = sshll.u32 %s3, 4
      %s59 = int_to_ptr.hbm [resolvable:$true] %s58
      %61 = dma.vmem_to_hbm [thread:$0]  %s57, 16, %s59, [#allocation4]
    $region17: #{tpu_custom_call.1} parent=1 // pred_fallthru
      _
    // Predicated region
    $region18: #{tpu_custom_call.1} parent=1 // pred_check
      _
    $region19: #{tpu_custom_call.1} parent=1 // pred_check_branch
      %63 = sbr.rel (0) target = $region21
    $region20: #{tpu_custom_call.1} parent=1 // pred_region
      %65 = dma.done [#allocation4], 16
    $region21: #{tpu_custom_call.1} parent=1 // pred_fallthru
      _
    %66 = vsyncpa [#allocation4], 1

</llo_original>
